<compile_context>
chip_gen: v6e
topology: v6e:2x2x1
jax: 0.10.0
libtpu: 0.0.40
codegen_flags: <defaults>
</compile_context>

<pallas_src>
import functools
import math

import jax
import jax.numpy as jnp
from jax.experimental import pallas as pl
from jax.experimental.pallas import tpu as pltpu


_LANE = 128            # TPU lane width
_MIN_TILE = 512        # don't shrink lane tiles below this
_MIN_GRID_STEPS = 4    # keep both v7x TensorCores fed when the tensor is big


def _cdiv(a, b):
    return -(-a // b)


def _round_up(a, b):
    return _cdiv(a, b) * b


def _choose_tile_e(E, B_eff, itemsize, target_block_bytes):
    """Pick the lane-tile width for the (B, TILE_E) block."""
    if E <= _LANE:
        return E                                   # one block == full extent
    full = (E // _LANE) * _LANE                    # largest lane-aligned tile <= E
    cap = max(_LANE,
              (target_block_bytes // (B_eff * itemsize)) // _LANE * _LANE)
    tile = min(full, cap)
    # Split further so megacore (v7x, 2 TCs) sees enough parallel grid steps.
    while tile > _MIN_TILE and _cdiv(E, tile) < _MIN_GRID_STEPS:
        tile = max(_MIN_TILE, ((tile // 2) // _LANE) * _LANE)
    return tile


def _drop_path_kernel(scale_ref, x_ref, o_ref):
    # scale_ref: (B, 1) in VMEM (x.dtype, grid-invariant / resident)
    # x_ref, o_ref: (B, TILE_E) lane-dense VMEM tiles.
    o_ref[...] = (x_ref[...] * scale_ref[...]).astype(o_ref.dtype)


@functools.partial(jax.jit, static_argnames=("tile_e",))
def _scale_rows(x2, scale2, *, tile_e):
    """out[b, :] = x2[b, :] * scale2[b, 0]   (memory-bound, single pass)."""
    B, E = x2.shape
    grid = (_cdiv(E, tile_e),)
    nbytes = 2 * x2.size * x2.dtype.itemsize + scale2.size * scale2.dtype.itemsize
    return pl.pallas_call(
        _drop_path_kernel,
        out_shape=jax.ShapeDtypeStruct(x2.shape, x2.dtype),
        grid=grid,
        in_specs=[
            # Per-sample scales: one tiny block, constant index_map -> resident.
            pl.BlockSpec((B, 1), lambda j: (0, 0)),
            # Lane-dense activation slab; the last block may be partial
            # (Pallas clips the DMA and the write-back), so no padding needed.
            pl.BlockSpec((B, tile_e), lambda j: (0, j)),
        ],
        out_specs=pl.BlockSpec((B, tile_e), lambda j: (0, j)),
        compiler_params=pltpu.CompilerParams(
            dimension_semantics=("parallel",),
            vmem_limit_bytes=32 * 1024 * 1024),
        cost_estimate=pl.CostEstimate(
            flops=x2.size, transcendentals=0, bytes_accessed=nbytes),
    )(scale2, x2)


def drop_path_forward(x, drop_prob=0.0, training=False, key=None,
                      *, target_block_bytes=4 * 1024 * 1024):
    """DropPath forward.  x: (B, ...). Returns an array of the same shape."""
    if drop_prob == 0.0 or not training:
        return x                                   # identity fast path
    if key is None:
        raise ValueError("drop_path_forward requires a PRNG `key` when "
                         "training with drop_prob > 0")

    keep_prob = 1.0 - drop_prob
    B = x.shape[0]
    E = math.prod(x.shape[1:]) if x.ndim > 1 else 1

    # Per-sample keep decision, matching torch: floor(keep_prob + U[0,1)).
    u = jax.random.uniform(key, (B,), dtype=jnp.float32)
    scale = (jnp.floor(keep_prob + u) / keep_prob).astype(x.dtype)   # 0 or 1/kp
    scale2 = scale.reshape(B, 1)

    # VMEM footprint estimate: Mosaic pads the block's sublane dim (=B) to the
    # dtype's native packing (8 for 4-byte, 16 for 2-byte, 32 for 1-byte).
    itemsize = x.dtype.itemsize
    pack = max(8, 32 // itemsize)
    B_eff = _round_up(B, pack)
    tile_e = _choose_tile_e(E, B_eff, itemsize, target_block_bytes)

    x2 = x.reshape(B, E)                           # pure bitcast, no copy
    out2 = _scale_rows(x2, scale2, tile_e=tile_e)
    return out2.reshape(x.shape)


def _reference_drop_path(x, drop_prob, training, key):
    """Pure-JAX reference mirroring the PyTorch drop_path_f formula."""
    if drop_prob == 0.0 or not training:
        return x
    keep_prob = 1.0 - drop_prob
    B = x.shape[0]
    u = jax.random.uniform(key, (B,), dtype=jnp.float32)
    scale = (jnp.floor(keep_prob + u) / keep_prob).astype(x.dtype)
    return x * scale.reshape((B,) + (1,) * (x.ndim - 1))


if __name__ == "__main__":
    root = jax.random.PRNGKey(0)
    k_x1, k_x2, k_x3, k_m1, k_m2, k_m3 = jax.random.split(root, 6)

    # Case 1: Swin-like NHWC activation, lane-aligned sample size (E = 8192).
    x1 = jax.random.normal(k_x1, (2, 16, 16, 32), jnp.float32)
    out1 = jax.block_until_ready(
        drop_path_forward(x1, drop_prob=0.25, training=True, key=k_m1))
    ref1 = _reference_drop_path(x1, 0.25, True, k_m1)
    assert out1.shape == x1.shape, out1.shape
    assert jnp.allclose(out1, ref1, atol=1e-6, rtol=1e-6), (
        float(jnp.max(jnp.abs(out1 - ref1))))

    # Case 2: bf16 token tensor (B, L, C) — packed-dtype path (E = 768).
    x2 = jax.random.normal(k_x2, (4, 8, 96), jnp.bfloat16)
    out2 = jax.block_until_ready(
        drop_path_forward(x2, drop_prob=0.5, training=True, key=k_m2))
    ref2 = _reference_drop_path(x2, 0.5, True, k_m2)
    assert out2.shape == x2.shape, out2.shape
    assert jnp.allclose(out2.astype(jnp.float32), ref2.astype(jnp.float32),
                        atol=1e-2, rtol=1e-2)

    # Case 3: awkward non-128-aligned sample size (E = 3500) — exercises the
    # ragged final lane-block; no wrapper pad / slice-back anywhere.
    x3 = jax.random.normal(k_x3, (2, 50, 70), jnp.float32)
    out3 = jax.block_until_ready(
        drop_path_forward(x3, drop_prob=0.4, training=True, key=k_m3))
    ref3 = _reference_drop_path(x3, 0.4, True, k_m3)
    assert out3.shape == x3.shape, out3.shape
    assert jnp.allclose(out3, ref3, atol=1e-6, rtol=1e-6), (
        float(jnp.max(jnp.abs(out3 - ref3))))

    # Case 4: eval mode / zero drop-prob are identity (no kernel launched).
    assert drop_path_forward(x1, drop_prob=0.25, training=False, key=k_m1) is x1
    assert drop_path_forward(x1, drop_prob=0.0, training=True, key=k_m1) is x1

    print("KERNEL_OK")
</pallas_src>

<mosaic_0001>
module attributes {stable_mosaic.version = 11 : i64} {
  func.func @_drop_path_kernel(%arg0: i32, %arg1: memref<2x1xf32, #tpu.memory_space<vmem>>, %arg2: memref<2x2048xf32, #tpu.memory_space<vmem>>, %arg3: memref<2x2048xf32, #tpu.memory_space<vmem>>) attributes {dimension_semantics = [#tpu.dimension_semantics<parallel>], iteration_bounds = array<i64: 4>, scalar_prefetch = 0 : i64, scratch_operands = 0 : i64, tpu.core_type = #tpu.core_type<tc>, window_params = [{pipeline_mode = #tpu.pipeline_mode<synchronous>, transform_indices = @transform_0, window_bounds = array<i64: 2, 1>}, {transform_indices = @transform_1, window_bounds = array<i64: 2, 2048>}, {transform_indices = @transform_2, window_bounds = array<i64: 2, 2048>}]} {
    %c0 = arith.constant 0 : index
    %c0_0 = arith.constant 0 : index
    %0 = vector.load %arg2[%c0, %c0_0] : memref<2x2048xf32, #tpu.memory_space<vmem>>, vector<2x2048xf32>
    %c0_1 = arith.constant 0 : index
    %c0_2 = arith.constant 0 : index
    %1 = vector.load %arg1[%c0_1, %c0_2] : memref<2x1xf32, #tpu.memory_space<vmem>>, vector<2x1xf32>
    %2 = vector.broadcast %1 : vector<2x1xf32> to vector<2x2048xf32>
    %3 = arith.mulf %0, %2 : vector<2x2048xf32>
    %c0_3 = arith.constant 0 : index
    %c0_4 = arith.constant 0 : index
    %4 = vector.load %arg3[%c0_3, %c0_4] : memref<2x2048xf32, #tpu.memory_space<vmem>>, vector<2x2048xf32>
    tpu.vector_store %arg3[%c0_3, %c0_4], %3 {strides = array<i32>} : memref<2x2048xf32, #tpu.memory_space<vmem>>, vector<2x2048xf32>,
    return
  }
  func.func @transform_0(%arg0: i32) -> (i32, i32) {
    %c0_i32 = arith.constant 0 : i32
    %c0_i32_0 = arith.constant 0 : i32
    %c0_i32_1 = arith.constant 0 : i32
    return %c0_i32, %c0_i32_0 : i32, i32
  }
  func.func @transform_1(%arg0: i32) -> (i32, i32) {
    %c0_i32 = arith.constant 0 : i32
    %c0_i32_0 = arith.constant 0 : i32
    return %c0_i32, %arg0 : i32, i32
  }
  func.func @transform_2(%arg0: i32) -> (i32, i32) {
    %c0_i32 = arith.constant 0 : i32
    %c0_i32_0 = arith.constant 0 : i32
    return %c0_i32, %arg0 : i32, i32
  }
}

</mosaic_0001>

<llo_original>
// kernel: _scale_rows.1
$region0: #{_scale_rows.1}
  #allocation0 [shape = 'u32[]', space=smem, size = 0x4, offset = 0x4, fixed_abs, tag = 'smem constant byte address 0x4 - core index']
  #allocation1 [shape = 'u32[144,128]{1,0:T(1,128)}', space=vmem, size = 0x12000, scoped, tag = 'internal scratch']
  %s0 = inlined_call_operand.vmem [shape: f32[2,1], index: 0, kind: input, shape index: {}]
  %s1 = inlined_call_operand.hbm [shape: f32[2,8192], index: 1, kind: input, shape index: {}]
  %s2 = inlined_call_operand.hbm [shape: f32[2,8192], index: 2, kind: output, shape index: {}]
  %s3 = sld [smem:[#allocation0]]
  $region45: #{_scale_rows.1} parent=0
    _
  %s5 = ssub.s32 1, %s3
  %s6 = scalar_select 0, %s5, %s3
  $region1: #{_scale_rows.1} parent=0
    #allocation2 [shape = 'u8[32768]{0}', space=vmem, size = 0x8000, scoped, tag = 'input window, operand 1']
    #allocation3 [shape = 's32[2]{0}', space=sflag, size = 0x8, scoped, tag = 'scoped memory for _scale_rows.1']
    #allocation4 [shape = 's32[2]{0}', space=sflag, size = 0x8, scoped, tag = 'scoped memory for _scale_rows.1']
    #allocation5 [shape = 'u8[32768]{0}', space=vmem, size = 0x8000, scoped, tag = 'output window, operand 0']
    %7 = vsyncpa [#allocation3], 0
    %s8 = scalar_lea.sflag [#allocation3], 1
    %9 = vsyncpa %s8, 0
    %10 = vsyncpa [#allocation4], 0
    %s11 = scalar_lea.sflag [#allocation4], 1
    %12 = vsyncpa %s11, 0
    loop: start=0, step=1, limit=6
    $region2: #{_scale_rows.1} parent=1 // loop_pre_header
      _
    $region3: #{_scale_rows.1} parent=1 // loop_header
      %s14 = sphi 0, %s18
      %p15 = scmp.ge.s32.totalorder %s14, 6
      %s22 = sphi 0, %s22
      %s24 = sphi 0, %s22
      %s25 = sphi 0, %s24
      %s39 = sphi 0, %s25
      %s45 = sphi 0, %s47
      %s48 = sphi 0, %s45
      %s49 = sphi 0, %s48
      %s65 = sphi 0, %s49
      %s71 = sphi 0, %s73
      %s74 = sphi 0, %s71
      %s75 = sphi 0, %s74
      %s91 = sphi 0, %s75
    $region4: #{_scale_rows.1} parent=1 // loop_header_branch
      %17 = sbr.rel (%p15) target = $region8
    $region5: #{_scale_rows.1} parent=1 // loop_body
      %s19 = ssub.s32 %s14, 1
      %s20 = ssub.s32 %s14, 2
      %s21 = sadd.s32 %s14, 1
      %s23 = sadd.s32 %s22, 1
      %p26 = scmp.eq.s32.totalorder %s14, 3
      %p27 = scmp.ne.s32.totalorder %s22, %s24
      %p28 = scmp.eq.s32.totalorder %s14, 0
      %p29 = por %p27, %p28
      %p30 = scmp.ne.s32.totalorder %s22, %s24
      %p31 = scmp.eq.s32.totalorder %s19, 3
      %p32 = por %p30, %p31
      %p33 = scmp.ne.s32.totalorder %s24, %s25
      %p34 = scmp.eq.s32.totalorder %s19, 0
      %p35 = por %p33, %p34
      %p36 = scmp.ne.s32.totalorder %s24, %s25
      %p37 = scmp.eq.s32.totalorder %s20, 3
      %p38 = por %p36, %p37
      %p40 = scmp.ne.s32.totalorder %s25, %s39
      %p41 = scmp.eq.s32.totalorder %s20, 0
      %p42 = por %p40, %p41
      %s43 = ssub.s32 %s14, %s21
      %p44 = scmp.eq.s32.totalorder %s43, 0
      %s46 = sadd.s32 %s45, 1
      %s47 = scalar_select %p44, %s45, %s46
      %p50 = pneg %p44
      %p51 = scmp.eq.s32.totalorder %s14, 3
      %p52 = por %p50, %p51
      %p53 = scmp.ne.s32.totalorder %s45, %s48
      %p54 = scmp.eq.s32.totalorder %s14, 0
      %p55 = por %p53, %p54
      %p56 = scmp.ne.s32.totalorder %s45, %s48
      %p57 = scmp.eq.s32.totalorder %s19, 3
      %p58 = por %p56, %p57
      %p59 = scmp.ne.s32.totalorder %s48, %s49
      %p60 = scmp.eq.s32.totalorder %s19, 0
      %p61 = por %p59, %p60
      %p62 = scmp.ne.s32.totalorder %s48, %s49
      %p63 = scmp.eq.s32.totalorder %s20, 3
      %p64 = por %p62, %p63
      %p66 = scmp.ne.s32.totalorder %s49, %s65
      %p67 = scmp.eq.s32.totalorder %s20, 0
      %p68 = por %p66, %p67
      %s69 = ssub.s32 %s14, %s21
      %p70 = scmp.eq.s32.totalorder %s69, 0
      %s72 = sadd.s32 %s71, 1
      %s73 = scalar_select %p70, %s71, %s72
      %p76 = pneg %p70
      %p77 = scmp.eq.s32.totalorder %s14, 3
      %p78 = por %p76, %p77
      %p79 = scmp.ne.s32.totalorder %s71, %s74
      %p80 = scmp.eq.s32.totalorder %s14, 0
      %p81 = por %p79, %p80
      %p82 = scmp.ne.s32.totalorder %s71, %s74
      %p83 = scmp.eq.s32.totalorder %s19, 3
      %p84 = por %p82, %p83
      %p85 = scmp.ne.s32.totalorder %s74, %s75
      %p86 = scmp.eq.s32.totalorder %s19, 0
      %p87 = por %p85, %p86
      %p88 = scmp.ne.s32.totalorder %s74, %s75
      %p89 = scmp.eq.s32.totalorder %s20, 3
      %p90 = por %p88, %p89
      %p92 = scmp.ne.s32.totalorder %s75, %s91
      %p93 = scmp.eq.s32.totalorder %s20, 0
      %p94 = por %p92, %p93
      %p95 = scmp.le.s32.totalorder 1, %s14
      %p96 = scmp.lt.s32.totalorder %s14, 5
      %p97 = pnand %p95, %p96
      %p98 = pneg %p97
      // Predicated region
      $region9: #{_scale_rows.1} parent=5 // pred_check
        _
      $region10: #{_scale_rows.1} parent=5 // pred_check_branch
        %100 = sbr.rel (%p97) target = $region12
      $region11: #{_scale_rows.1} parent=5 // pred_region
        %s101 = ssub.s32 %s14, 1
        // Predicated region
        $region13: #{_scale_rows.1} parent=11 // pred_check
          %p102 = pneg %p35
        $region14: #{_scale_rows.1} parent=11 // pred_check_branch
          %104 = sbr.rel (%p102) target = $region16
        $region15: #{_scale_rows.1} parent=11 // pred_region
          _
        $region16: #{_scale_rows.1} parent=11 // pred_fallthru
          _
      $region12: #{_scale_rows.1} parent=5 // pred_fallthru
        _
      %p105 = scmp.lt.s32.totalorder %s14, 4
      // Predicated region
      $region17: #{_scale_rows.1} parent=5 // pred_check
        %p106 = pneg %p105
      $region18: #{_scale_rows.1} parent=5 // pred_check_branch
        %108 = sbr.rel (%p106) target = $region20
      $region19: #{_scale_rows.1} parent=5 // pred_region
        // Predicated region
        $region21: #{_scale_rows.1} parent=19 // pred_check
          %p109 = pneg %p55
        $region22: #{_scale_rows.1} parent=19 // pred_check_branch
          %111 = sbr.rel (%p109) target = $region24
        $region23: #{_scale_rows.1} parent=19 // pred_region
          %s112 = sand.u32 %s45, 1
          %s113 = scalar_lea.sflag [#allocation3], %s112
          %s114 = sand.u32 %s45, 1
          %s115 = smul.addr %s114, 32
          %s116 = scalar_lea.vmem [#allocation2], %s115
          %s117 = smul.u32 16, %s14
          %s119 = ssub.s32 512, 512
          %120 = vsyncadd %s113, %s119
          %s121 = smul.addr %s117, 32
          %s122 = scalar_lea.hbm %s1, %s121
          %s124 = sshll.u32 %s116, 4
          %s125 = int_to_ptr.vmem [resolvable:$true] %s124
          %127 = dma.hbm_to_vmem [thread:$0]  %s122, 512, %s125, %s113
        $region24: #{_scale_rows.1} parent=19 // pred_fallthru
          _
      $region20: #{_scale_rows.1} parent=5 // pred_fallthru
        _
      %p128 = scmp.le.s32.totalorder 1, %s14
      %p129 = scmp.lt.s32.totalorder %s14, 5
      %p130 = pnand %p128, %p129
      %p131 = pneg %p130
      // Predicated region
      $region25: #{_scale_rows.1} parent=5 // pred_check
        _
      $region26: #{_scale_rows.1} parent=5 // pred_check_branch
        %133 = sbr.rel (%p130) target = $region28
      $region27: #{_scale_rows.1} parent=5 // pred_region
        %s134 = ssub.s32 %s14, 1
        %s135 = sand.u32 %s48, 1
        %s136 = scalar_lea.sflag [#allocation3], %s135
        %s137 = sand.u32 %s48, 1
        %s138 = smul.addr %s137, 32
        %s139 = scalar_lea.vmem [#allocation2], %s138
        // Predicated region
        $region29: #{_scale_rows.1} parent=27 // pred_check
          %p140 = pneg %p61
        $region30: #{_scale_rows.1} parent=27 // pred_check_branch
          %142 = sbr.rel (%p140) target = $region32
        $region31: #{_scale_rows.1} parent=27 // pred_region
          %143 = dma.done %s136, 512
        $region32: #{_scale_rows.1} parent=27 // pred_fallthru
          _
        %p144 = pneg %p35
        %p145 = pneg %p32
        %s146 = sand.u32 %s48, 1
        %s147 = scalar_lea.sflag [#allocation3], %s146
        %s148 = sand.u32 %s48, 1
        %s149 = smul.addr %s148, 32
        %s150 = scalar_lea.vmem [#allocation2], %s149
        %p151 = pneg %p61
        %p152 = pneg %p58
        %p153 = pneg %p87
        %p154 = pneg %p84
        %s155 = sand.u32 %s74, 1
        %s156 = scalar_lea.sflag [#allocation4], %s155
        %s157 = sand.u32 %s74, 1
        %s158 = smul.addr %s157, 32
        %s159 = scalar_lea.vmem [#allocation5], %s158
        %s160 = smul.u32 16, %s19
        %s161 = smul.u32 16, %s19
        %v162 = vld [vmem:[%s139] sm:$0xff]
        %v163 = vld [vmem:[%s139 + $0x8] sm:$0xff]
        %v164 = vld [vmem:[%s139 + $0x10] sm:$0xff]
        %v165 = vld [vmem:[%s139 + $0x18] sm:$0xff]
        %v166 = vld [vmem:[%s0] sm:$0x3]
        %168 = vset.pattern.permute.xlu0 0
        %169 = vperm.xlu0 %168, %v166
        %v170 = vpop.permute.xlu0 %169
        %v172 = vunpack.c.l.s4 269488144
        %v173 = vunpack.c.0.s8 %v172
        %v174 = vlaneseq
        %v175 = vshrl.u32 %v174, 7
        %v176 = vsub.s32 %v173, %v175
        %v177 = vrot.slane %v170, %v176
        %v179 = vmul.f32 %v162, %v177
        %v180 = vmul.f32 %v163, %v177
        %v181 = vmul.f32 %v164, %v177
        %v182 = vmul.f32 %v165, %v177
        %183 = vst [vmem:[%s159] sm:$0xff] %v179
        %184 = vst [vmem:[%s159 + $0x8] sm:$0xff] %v180
        %185 = vst [vmem:[%s159 + $0x10] sm:$0xff] %v181
        %186 = vst [vmem:[%s159 + $0x18] sm:$0xff] %v182
        %s187 = sand.u32 %s74, 1
        %s188 = scalar_lea.sflag [#allocation4], %s187
        %s189 = sand.u32 %s74, 1
        %s190 = smul.addr %s189, 32
        %s191 = scalar_lea.vmem [#allocation5], %s190
        // Predicated region
        $region33: #{_scale_rows.1} parent=27 // pred_check
          %p192 = pneg %p84
        $region34: #{_scale_rows.1} parent=27 // pred_check_branch
          %194 = sbr.rel (%p192) target = $region36
        $region35: #{_scale_rows.1} parent=27 // pred_region
          %s195 = smul.u32 16, %s19
          %s197 = ssub.s32 512, 512
          %198 = vsyncadd %s188, %s197
          %s199 = smul.addr %s195, 32
          %s200 = scalar_lea.hbm %s2, %s199
          %s202 = sshll.u32 %s191, 4
          %s203 = int_to_ptr.vmem [resolvable:$true] %s202
          %205 = dma.vmem_to_hbm [thread:$0]  %s203, 512, %s200, %s188
        $region36: #{_scale_rows.1} parent=27 // pred_fallthru
          _
      $region28: #{_scale_rows.1} parent=5 // pred_fallthru
        _
      %p206 = scmp.le.s32.totalorder 2, %s14
      // Predicated region
      $region37: #{_scale_rows.1} parent=5 // pred_check
        %p207 = pneg %p206
      $region38: #{_scale_rows.1} parent=5 // pred_check_branch
        %209 = sbr.rel (%p207) target = $region40
      $region39: #{_scale_rows.1} parent=5 // pred_region
        %s210 = ssub.s32 %s14, 2
        // Predicated region
        $region41: #{_scale_rows.1} parent=39 // pred_check
          %p211 = pneg %p90
        $region42: #{_scale_rows.1} parent=39 // pred_check_branch
          %213 = sbr.rel (%p211) target = $region44
        $region43: #{_scale_rows.1} parent=39 // pred_region
          %s214 = sand.u32 %s75, 1
          %s215 = scalar_lea.sflag [#allocation4], %s214
          %s216 = sand.u32 %s75, 1
          %s217 = smul.addr %s216, 32
          %s218 = scalar_lea.vmem [#allocation5], %s217
          %219 = dma.done %s215, 512
        $region44: #{_scale_rows.1} parent=39 // pred_fallthru
          _
      $region40: #{_scale_rows.1} parent=5 // pred_fallthru
        _
    $region6: #{_scale_rows.1} parent=1 // loop_footer
      %s18 = sadd.s32 1, %s14
    $region7: #{_scale_rows.1} parent=1 // loop_footer_branch
      %13 = sbr.rel target = $region3
    $region8: #{_scale_rows.1} parent=1 // loop_exit
      _
    %220 = vsyncpa [#allocation3], 1
    %s221 = scalar_lea.sflag [#allocation3], 1
    %222 = vsyncpa %s221, 1
    %223 = vsyncpa [#allocation4], 1
    %s224 = scalar_lea.sflag [#allocation4], 1
    %225 = vsyncpa %s224, 1

</llo_original>
